<compile_context>
chip_gen: v5e
topology: v5e:2x2
jax: 0.10.0
libtpu: 0.0.40
codegen_flags: <defaults>
</compile_context>

<pallas_src>
import numpy as np
import jax
import jax.numpy as jnp
from jax.experimental import pallas as pl
from jax.experimental.pallas import tpu as pltpu


def _bilinear_resize_matrix(in_size: int, out_size: int) -> np.ndarray:
    """(out_size, in_size) bilinear weights, align_corners=False semantics.

    Every row sums to 1.0, which is what lets the conv bias commute with the
    resize (resize(W x + b) == W * resize(x) + b).
    """
    scale = in_size / out_size
    R = np.zeros((out_size, in_size), dtype=np.float64)
    for i in range(out_size):
        src = max((i + 0.5) * scale - 0.5, 0.0)
        i0 = int(np.floor(src))
        lam = src - i0
        i0 = min(i0, in_size - 1)
        i1 = min(i0 + 1, in_size - 1)
        R[i, i0] += 1.0 - lam
        R[i, i1] += lam
    return R


def _pick_batch_tile(B, C_in, C_out, cap):
    """Pick (bt, B_padded).

    Keeps bt*C_in / bt*C_out 8-sublane aligned whenever the batch axis is
    actually tiled, prefers >= 2 grid steps (v7x has two TensorCores), and
    zero-pads B instead of letting bt collapse for awkward batch sizes.
    """
    cap = max(1, min(B, cap))

    def aligned(bt):
        return (bt * C_in) % 8 == 0 and (bt * C_out) % 8 == 0

    def ok(bt):
        return bt == B or aligned(bt)   # full-array blocks are always legal

    # Exact divisors of B near the cap; among those prefer >= 2 grid steps.
    best = None
    for bt in range(cap, max(cap // 2, 1) - 1, -1):
        if B % bt == 0 and ok(bt):
            best = best or bt
            if B // bt >= 2:
                return bt, B
    if best is not None:
        return best, B

    # Awkward B: keep bt near the cap, zero-pad the batch, minimize padding.
    cands = [bt for bt in range(max(cap // 2, 1), cap + 1) if aligned(bt)]
    if not cands:
        return B, B                      # single untiled step, always legal
    pad_to = lambda bt: -(-B // bt) * bt
    bt = min(cands, key=lambda t: (pad_to(t), -t))
    return bt, pad_to(bt)


def _output_adjust_kernel(x_ref, rt_ref, conv_ref, bias_ref, o_ref):
    # x_ref:    (bt*C_in, H*W)        VMEM  rows ordered (b, c)
    # rt_ref:   (H*W, Ho*Wo)          VMEM  kron(Rh, Rw)^T  -- full bilinear resize
    # conv_ref: (bt*C_out, bt*C_in)   VMEM  I_bt (x) W  (block-diagonal 1x1 conv)
    # bias_ref: (bt*C_out, 1)         VMEM  bias per (b, o) row
    # o_ref:    (bt*C_out, Ho*Wo)     VMEM  rows ordered (b, o) == flattened NCHW
    z = jnp.dot(x_ref[...], rt_ref[...], preferred_element_type=jnp.float32)
    y = jnp.dot(conv_ref[...], z, preferred_element_type=jnp.float32)
    o_ref[...] = (y + bias_ref[...]).astype(o_ref.dtype)


def output_adjust(x, weight, bias, resize_shape, *, max_batch_tile=32):
    """x: (B, C_in, H, W) NCHW -> (B, C_out, H_out, W_out) NCHW."""
    B, C_in, H, W = x.shape
    Ho, Wo = resize_shape
    HW, HoWo = H * W, Ho * Wo

    w2 = jnp.asarray(weight, jnp.float32).reshape(-1, C_in)       # (C_out, C_in)
    C_out = w2.shape[0]
    b1 = jnp.asarray(bias, jnp.float32).reshape(C_out)

    # Dense separable-product resize operator, transposed: (H*W, Ho*Wo).
    Rh = _bilinear_resize_matrix(H, Ho)                            # (Ho, H)
    Rw = _bilinear_resize_matrix(W, Wo)                            # (Wo, W)
    RT = jnp.asarray(np.kron(Rh, Rw).T, jnp.float32)               # (H*W, Ho*Wo)

    bt, Bp = _pick_batch_tile(B, C_in, C_out, max_batch_tile)
    nb = Bp // bt

    x_rows = x.astype(jnp.float32).reshape(B * C_in, HW)           # metadata reshape
    if Bp != B:        # zero-pad awkward batch sizes (keeps bt near the cap)
        x_rows = jnp.pad(x_rows, ((0, (Bp - B) * C_in), (0, 0)))

    conv_op = jnp.kron(jnp.eye(bt, dtype=jnp.float32), w2)         # (bt*C_out, bt*C_in)
    bias_col = jnp.tile(b1, bt).reshape(bt * C_out, 1)             # bias per (b, o) row

    # VMEM footprint (double-buffered ins/outs + matmul temporaries), with slack.
    lane = lambda n: -(-n // 128) * 128
    est = 4 * (2 * bt * C_in * HW                 # x double-buffer
               + 2 * bt * C_out * HoWo            # out double-buffer
               + 2 * HW * lane(HoWo)              # resize operator
               + 2 * bt * C_out * lane(bt * C_in) # conv operator
               + 2 * bt * C_out * 128             # bias column (lane-padded)
               + (bt * C_in + bt * C_out) * lane(HoWo))   # z / y temporaries
    vmem_limit = int(min(max(2 * est, 16 * 2**20), 48 * 2**20))

    out_flat = pl.pallas_call(
        _output_adjust_kernel,
        out_shape=jax.ShapeDtypeStruct((Bp * C_out, HoWo), x.dtype),
        grid=(nb,),
        in_specs=[
            pl.BlockSpec((bt * C_in, HW), lambda i: (i, 0)),          # x rows (b, c)
            pl.BlockSpec((HW, HoWo), lambda i: (0, 0)),               # resize operator
            pl.BlockSpec((bt * C_out, bt * C_in), lambda i: (0, 0)),  # I_bt (x) W
            pl.BlockSpec((bt * C_out, 1), lambda i: (0, 0)),          # bias column
        ],
        out_specs=pl.BlockSpec((bt * C_out, HoWo), lambda i: (i, 0)),
        compiler_params=pltpu.CompilerParams(
            dimension_semantics=("parallel",),
            vmem_limit_bytes=vmem_limit),
    )(x_rows, RT, conv_op, bias_col)

    if Bp != B:                                   # drop zero-padded batches
        out_flat = out_flat[: B * C_out]
    # Metadata-only reshape back to NCHW (no extra HBM pass).
    return out_flat.reshape(B, C_out, Ho, Wo)


if __name__ == "__main__":
    # Setup consistent with OutputAdjust.__init__:
    #   resize_shape=(24, 20), in_channels=4, out_channels=8
    B, C_in, C_out = 2, 4, 8
    H = W = 16
    resize_shape = (24, 20)

    key = jax.random.PRNGKey(0)
    kx, kw, kb = jax.random.split(key, 3)
    x = jax.random.normal(kx, (B, C_in, H, W), dtype=jnp.float32)
    # nn.Conv2d(in, out, kernel_size=1) parameters.
    weight = jax.random.normal(kw, (C_out, C_in, 1, 1), dtype=jnp.float32) * 0.1
    bias = jax.random.normal(kb, (C_out,), dtype=jnp.float32) * 0.1

    out = output_adjust(x, weight, bias, resize_shape)
    out = jax.block_until_ready(out)

    # Pure-JAX reference (1x1 conv then separable bilinear resize).
    Rh = jnp.asarray(_bilinear_resize_matrix(H, resize_shape[0]), jnp.float32)
    Rw = jnp.asarray(_bilinear_resize_matrix(W, resize_shape[1]), jnp.float32)
    w2 = weight.reshape(C_out, C_in)
    y_ref = jnp.einsum("oc,bchw->bohw", w2, x) + bias[None, :, None, None]
    out_ref = jnp.einsum("ph,qw,bohw->bopq", Rh, Rw, y_ref)

    np.testing.assert_allclose(np.asarray(out), np.asarray(out_ref),
                               rtol=1e-4, atol=1e-4)
    assert out.shape == (B, C_out, resize_shape[0], resize_shape[1])
    print("KERNEL_OK")
</pallas_src>

<mosaic_0001>
module attributes {stable_mosaic.version = 11 : i64} {
  func.func @_output_adjust_kernel(%arg0: i32, %arg1: memref<8x256xf32, #tpu.memory_space<vmem>>, %arg2: memref<256x480xf32, #tpu.memory_space<vmem>>, %arg3: memref<16x8xf32, #tpu.memory_space<vmem>>, %arg4: memref<16x1xf32, #tpu.memory_space<vmem>>, %arg5: memref<16x480xf32, #tpu.memory_space<vmem>>) attributes {dimension_semantics = [#tpu.dimension_semantics<parallel>], iteration_bounds = array<i64: 1>, scalar_prefetch = 0 : i64, scratch_operands = 0 : i64, tpu.core_type = #tpu.core_type<tc>, window_params = [{transform_indices = @transform_0, window_bounds = array<i64: 8, 256>}, {pipeline_mode = #tpu.pipeline_mode<synchronous>, transform_indices = @transform_1, window_bounds = array<i64: 256, 480>}, {pipeline_mode = #tpu.pipeline_mode<synchronous>, transform_indices = @transform_2, window_bounds = array<i64: 16, 8>}, {pipeline_mode = #tpu.pipeline_mode<synchronous>, transform_indices = @transform_3, window_bounds = array<i64: 16, 1>}, {transform_indices = @transform_4, window_bounds = array<i64: 16, 480>}]} {
    %c0 = arith.constant 0 : index
    %c0_0 = arith.constant 0 : index
    %0 = vector.load %arg1[%c0, %c0_0] : memref<8x256xf32, #tpu.memory_space<vmem>>, vector<8x256xf32>
    %c0_1 = arith.constant 0 : index
    %c0_2 = arith.constant 0 : index
    %1 = vector.load %arg2[%c0_1, %c0_2] : memref<256x480xf32, #tpu.memory_space<vmem>>, vector<256x480xf32>
    %cst = arith.constant dense<0.000000e+00> : vector<8x480xf32>
    %2 = tpu.matmul %0, %1, %cst {dimension_numbers = #tpu.dot_dimension_numbers<[1], [0], [0], [1], [0, 0, 1, 1], [], []>} : vector<8x256xf32>, vector<256x480xf32>, vector<8x480xf32> -> vector<8x480xf32>
    %c0_3 = arith.constant 0 : index
    %c0_4 = arith.constant 0 : index
    %3 = vector.load %arg3[%c0_3, %c0_4] : memref<16x8xf32, #tpu.memory_space<vmem>>, vector<16x8xf32>
    %cst_5 = arith.constant dense<0.000000e+00> : vector<16x480xf32>
    %4 = tpu.matmul %3, %2, %cst_5 {dimension_numbers = #tpu.dot_dimension_numbers<[1], [0], [0], [1], [0, 0, 1, 1], [], []>} : vector<16x8xf32>, vector<8x480xf32>, vector<16x480xf32> -> vector<16x480xf32>
    %c0_6 = arith.constant 0 : index
    %c0_7 = arith.constant 0 : index
    %5 = vector.load %arg4[%c0_6, %c0_7] : memref<16x1xf32, #tpu.memory_space<vmem>>, vector<16x1xf32>
    %6 = vector.broadcast %5 : vector<16x1xf32> to vector<16x480xf32>
    %7 = arith.addf %4, %6 : vector<16x480xf32>
    %c0_8 = arith.constant 0 : index
    %c0_9 = arith.constant 0 : index
    %8 = vector.load %arg5[%c0_8, %c0_9] : memref<16x480xf32, #tpu.memory_space<vmem>>, vector<16x480xf32>
    tpu.vector_store %arg5[%c0_8, %c0_9], %7 {strides = array<i32>} : memref<16x480xf32, #tpu.memory_space<vmem>>, vector<16x480xf32>,
    return
  }
  func.func @transform_0(%arg0: i32) -> (i32, i32) {
    %c0_i32 = arith.constant 0 : i32
    %c0_i32_0 = arith.constant 0 : i32
    return %arg0, %c0_i32 : i32, i32
  }
  func.func @transform_1(%arg0: i32) -> (i32, i32) {
    %c0_i32 = arith.constant 0 : i32
    %c0_i32_0 = arith.constant 0 : i32
    %c0_i32_1 = arith.constant 0 : i32
    return %c0_i32, %c0_i32_0 : i32, i32
  }
  func.func @transform_2(%arg0: i32) -> (i32, i32) {
    %c0_i32 = arith.constant 0 : i32
    %c0_i32_0 = arith.constant 0 : i32
    %c0_i32_1 = arith.constant 0 : i32
    return %c0_i32, %c0_i32_0 : i32, i32
  }
  func.func @transform_3(%arg0: i32) -> (i32, i32) {
    %c0_i32 = arith.constant 0 : i32
    %c0_i32_0 = arith.constant 0 : i32
    %c0_i32_1 = arith.constant 0 : i32
    return %c0_i32, %c0_i32_0 : i32, i32
  }
  func.func @transform_4(%arg0: i32) -> (i32, i32) {
    %c0_i32 = arith.constant 0 : i32
    %c0_i32_0 = arith.constant 0 : i32
    return %arg0, %c0_i32 : i32, i32
  }
}

</mosaic_0001>

<llo_original>
// kernel: tpu_custom_call.1
$region0: #{tpu_custom_call.1}
  #allocation0 [shape = 'u32[]', space=smem, size = 0x4, offset = 0x4, fixed_abs, tag = 'smem constant byte address 0x4 - core index']
  #allocation1 [shape = 'u32[72,128]{1,0:T(1,128)}', space=vmem, size = 0x9000, scoped, tag = 'internal scratch']
  %s0 = inlined_call_operand.vmem [shape: f32[8,256], index: 0, kind: input, shape index: {}]
  %s1 = inlined_call_operand.vmem [shape: f32[256,480], index: 1, kind: input, shape index: {}]
  %s2 = inlined_call_operand.vmem [shape: f32[16,8], index: 2, kind: input, shape index: {}]
  %s3 = inlined_call_operand.vmem [shape: f32[16,1], index: 3, kind: input, shape index: {}]
  %s4 = inlined_call_operand.hbm [shape: f32[16,480], index: 4, kind: output, shape index: {}]
  %s5 = sld [smem:[#allocation0]]
  $region26: #{tpu_custom_call.1} parent=0
    _
  %s7 = ssub.s32 1, %s5
  %s8 = scalar_select 0, %s7, %s5
  $region1: #{tpu_custom_call.1} parent=0
    #allocation2 [shape = 'u8[32768]{0}', space=vmem, size = 0x8000, scoped, tag = 'output window, operand 0, single buffered']
    #allocation3 [shape = 's32[1]{0}', space=sflag, size = 0x4, scoped, tag = 'scoped memory for tpu_custom_call.1']
    %9 = vsyncpa [#allocation3], 0
    // Predicated region
    $region2: #{tpu_custom_call.1} parent=1 // pred_check
      _
    $region3: #{tpu_custom_call.1} parent=1 // pred_check_branch
      %11 = sbr.rel (0) target = $region5
    $region4: #{tpu_custom_call.1} parent=1 // pred_region
      _
    $region5: #{tpu_custom_call.1} parent=1 // pred_fallthru
      _
    // Predicated region
    $region6: #{tpu_custom_call.1} parent=1 // pred_check
      _
    $region7: #{tpu_custom_call.1} parent=1 // pred_check_branch
      %13 = sbr.rel (0) target = $region9
    $region8: #{tpu_custom_call.1} parent=1 // pred_region
      _
    $region9: #{tpu_custom_call.1} parent=1 // pred_fallthru
      _
    // Predicated region
    $region10: #{tpu_custom_call.1} parent=1 // pred_check
      _
    $region11: #{tpu_custom_call.1} parent=1 // pred_check_branch
      %15 = sbr.rel (0) target = $region13
    $region12: #{tpu_custom_call.1} parent=1 // pred_region
      _
    $region13: #{tpu_custom_call.1} parent=1 // pred_fallthru
      _
    // Predicated region
    $region14: #{tpu_custom_call.1} parent=1 // pred_check
      _
    $region15: #{tpu_custom_call.1} parent=1 // pred_check_branch
      %17 = sbr.rel (0) target = $region17
    $region16: #{tpu_custom_call.1} parent=1 // pred_region
      _
    $region17: #{tpu_custom_call.1} parent=1 // pred_fallthru
      _
    %v18 = vld [vmem:[%s0] sm:$0xff]
    %v19 = vld [vmem:[%s0 + $0x8] sm:$0xff]
    %v20 = vld [vmem:[%s1] sm:$0xff]
    %v21 = vld [vmem:[%s1 + $0x8] sm:$0xff]
    %v22 = vld [vmem:[%s1 + $0x10] sm:$0xff]
    %v23 = vld [vmem:[%s1 + $0x18] sm:$0xff]
    %v24 = vld [vmem:[%s1 + $0x20] sm:$0xff]
    %v25 = vld [vmem:[%s1 + $0x28] sm:$0xff]
    %v26 = vld [vmem:[%s1 + $0x30] sm:$0xff]
    %v27 = vld [vmem:[%s1 + $0x38] sm:$0xff]
    %v28 = vld [vmem:[%s1 + $0x40] sm:$0xff]
    %v29 = vld [vmem:[%s1 + $0x48] sm:$0xff]
    %v30 = vld [vmem:[%s1 + $0x50] sm:$0xff]
    %v31 = vld [vmem:[%s1 + $0x58] sm:$0xff]
    %v32 = vld [vmem:[%s1 + $0x60] sm:$0xff]
    %v33 = vld [vmem:[%s1 + $0x68] sm:$0xff]
    %v34 = vld [vmem:[%s1 + $0x70] sm:$0xff]
    %v35 = vld [vmem:[%s1 + $0x78] sm:$0xff]
    %v36 = vld [vmem:[%s1 + $0x80] sm:$0xff]
    %v37 = vld [vmem:[%s1 + $0x88] sm:$0xff]
    %v38 = vld [vmem:[%s1 + $0x90] sm:$0xff]
    %v39 = vld [vmem:[%s1 + $0x98] sm:$0xff]
    %v40 = vld [vmem:[%s1 + $0xa0] sm:$0xff]
    %v41 = vld [vmem:[%s1 + $0xa8] sm:$0xff]
    %v42 = vld [vmem:[%s1 + $0xb0] sm:$0xff]
    %v43 = vld [vmem:[%s1 + $0xb8] sm:$0xff]
    %v44 = vld [vmem:[%s1 + $0xc0] sm:$0xff]
    %v45 = vld [vmem:[%s1 + $0xc8] sm:$0xff]
    %v46 = vld [vmem:[%s1 + $0xd0] sm:$0xff]
    %v47 = vld [vmem:[%s1 + $0xd8] sm:$0xff]
    %v48 = vld [vmem:[%s1 + $0xe0] sm:$0xff]
    %v49 = vld [vmem:[%s1 + $0xe8] sm:$0xff]
    %v50 = vld [vmem:[%s1 + $0xf0] sm:$0xff]
    %v51 = vld [vmem:[%s1 + $0xf8] sm:$0xff]
    %v52 = vld [vmem:[%s1 + $0x100] sm:$0xff]
    %v53 = vld [vmem:[%s1 + $0x108] sm:$0xff]
    %v54 = vld [vmem:[%s1 + $0x110] sm:$0xff]
    %v55 = vld [vmem:[%s1 + $0x118] sm:$0xff]
    %v56 = vld [vmem:[%s1 + $0x120] sm:$0xff]
    %v57 = vld [vmem:[%s1 + $0x128] sm:$0xff]
    %v58 = vld [vmem:[%s1 + $0x130] sm:$0xff]
    %v59 = vld [vmem:[%s1 + $0x138] sm:$0xff]
    %v60 = vld [vmem:[%s1 + $0x140] sm:$0xff]
    %v61 = vld [vmem:[%s1 + $0x148] sm:$0xff]
    %v62 = vld [vmem:[%s1 + $0x150] sm:$0xff]
    %v63 = vld [vmem:[%s1 + $0x158] sm:$0xff]
    %v64 = vld [vmem:[%s1 + $0x160] sm:$0xff]
    %v65 = vld [vmem:[%s1 + $0x168] sm:$0xff]
    %v66 = vld [vmem:[%s1 + $0x170] sm:$0xff]
    %v67 = vld [vmem:[%s1 + $0x178] sm:$0xff]
    %v68 = vld [vmem:[%s1 + $0x180] sm:$0xff]
    %v69 = vld [vmem:[%s1 + $0x188] sm:$0xff]
    %v70 = vld [vmem:[%s1 + $0x190] sm:$0xff]
    %v71 = vld [vmem:[%s1 + $0x198] sm:$0xff]
    %v72 = vld [vmem:[%s1 + $0x1a0] sm:$0xff]
    %v73 = vld [vmem:[%s1 + $0x1a8] sm:$0xff]
    %v74 = vld [vmem:[%s1 + $0x1b0] sm:$0xff]
    %v75 = vld [vmem:[%s1 + $0x1b8] sm:$0xff]
    %v76 = vld [vmem:[%s1 + $0x1c0] sm:$0xff]
    %v77 = vld [vmem:[%s1 + $0x1c8] sm:$0xff]
    %v78 = vld [vmem:[%s1 + $0x1d0] sm:$0xff]
    %v79 = vld [vmem:[%s1 + $0x1d8] sm:$0xff]
    %v80 = vld [vmem:[%s1 + $0x1e0] sm:$0xff]
    %v81 = vld [vmem:[%s1 + $0x1e8] sm:$0xff]
    %v82 = vld [vmem:[%s1 + $0x1f0] sm:$0xff]
    %v83 = vld [vmem:[%s1 + $0x1f8] sm:$0xff]
    %v84 = vld [vmem:[%s1 + $0x200] sm:$0xff]
    %v85 = vld [vmem:[%s1 + $0x208] sm:$0xff]
    %v86 = vld [vmem:[%s1 + $0x210] sm:$0xff]
    %v87 = vld [vmem:[%s1 + $0x218] sm:$0xff]
    %v88 = vld [vmem:[%s1 + $0x220] sm:$0xff]
    %v89 = vld [vmem:[%s1 + $0x228] sm:$0xff]
    %v90 = vld [vmem:[%s1 + $0x230] sm:$0xff]
    %v91 = vld [vmem:[%s1 + $0x238] sm:$0xff]
    %v92 = vld [vmem:[%s1 + $0x240] sm:$0xff]
    %v93 = vld [vmem:[%s1 + $0x248] sm:$0xff]
    %v94 = vld [vmem:[%s1 + $0x250] sm:$0xff]
    %v95 = vld [vmem:[%s1 + $0x258] sm:$0xff]
    %v96 = vld [vmem:[%s1 + $0x260] sm:$0xff]
    %v97 = vld [vmem:[%s1 + $0x268] sm:$0xff]
    %v98 = vld [vmem:[%s1 + $0x270] sm:$0xff]
    %v99 = vld [vmem:[%s1 + $0x278] sm:$0xff]
    %v100 = vld [vmem:[%s1 + $0x280] sm:$0xff]
    %v101 = vld [vmem:[%s1 + $0x288] sm:$0xff]
    %v102 = vld [vmem:[%s1 + $0x290] sm:$0xff]
    %v103 = vld [vmem:[%s1 + $0x298] sm:$0xff]
    %v104 = vld [vmem:[%s1 + $0x2a0] sm:$0xff]
    %v105 = vld [vmem:[%s1 + $0x2a8] sm:$0xff]
    %v106 = vld [vmem:[%s1 + $0x2b0] sm:$0xff]
    %v107 = vld [vmem:[%s1 + $0x2b8] sm:$0xff]
    %v108 = vld [vmem:[%s1 + $0x2c0] sm:$0xff]
    %v109 = vld [vmem:[%s1 + $0x2c8] sm:$0xff]
    %v110 = vld [vmem:[%s1 + $0x2d0] sm:$0xff]
    %v111 = vld [vmem:[%s1 + $0x2d8] sm:$0xff]
    %v112 = vld [vmem:[%s1 + $0x2e0] sm:$0xff]
    %v113 = vld [vmem:[%s1 + $0x2e8] sm:$0xff]
    %v114 = vld [vmem:[%s1 + $0x2f0] sm:$0xff]
    %v115 = vld [vmem:[%s1 + $0x2f8] sm:$0xff]
    %v116 = vld [vmem:[%s1 + $0x300] sm:$0xff]
    %v117 = vld [vmem:[%s1 + $0x308] sm:$0xff]
    %v118 = vld [vmem:[%s1 + $0x310] sm:$0xff]
    %v119 = vld [vmem:[%s1 + $0x318] sm:$0xff]
    %v120 = vld [vmem:[%s1 + $0x320] sm:$0xff]
    %v121 = vld [vmem:[%s1 + $0x328] sm:$0xff]
    %v122 = vld [vmem:[%s1 + $0x330] sm:$0xff]
    %v123 = vld [vmem:[%s1 + $0x338] sm:$0xff]
    %v124 = vld [vmem:[%s1 + $0x340] sm:$0xff]
    %v125 = vld [vmem:[%s1 + $0x348] sm:$0xff]
    %v126 = vld [vmem:[%s1 + $0x350] sm:$0xff]
    %v127 = vld [vmem:[%s1 + $0x358] sm:$0xff]
    %v128 = vld [vmem:[%s1 + $0x360] sm:$0xff]
    %v129 = vld [vmem:[%s1 + $0x368] sm:$0xff]
    %v130 = vld [vmem:[%s1 + $0x370] sm:$0xff]
    %v131 = vld [vmem:[%s1 + $0x378] sm:$0xff]
    %v132 = vld [vmem:[%s1 + $0x380] sm:$0xff]
    %v133 = vld [vmem:[%s1 + $0x388] sm:$0xff]
    %v134 = vld [vmem:[%s1 + $0x390] sm:$0xff]
    %v135 = vld [vmem:[%s1 + $0x398] sm:$0xff]
    %v136 = vld [vmem:[%s1 + $0x3a0] sm:$0xff]
    %v137 = vld [vmem:[%s1 + $0x3a8] sm:$0xff]
    %v138 = vld [vmem:[%s1 + $0x3b0] sm:$0xff]
    %v139 = vld [vmem:[%s1 + $0x3b8] sm:$0xff]
    %v140 = vld [vmem:[%s1 + $0x3c0] sm:$0xff]
    %v141 = vld [vmem:[%s1 + $0x3c8] sm:$0xff]
    %v142 = vld [vmem:[%s1 + $0x3d0] sm:$0xff]
    %v143 = vld [vmem:[%s1 + $0x3d8] sm:$0xff]
    %v144 = vld [vmem:[%s1 + $0x3e0] sm:$0xff]
    %v145 = vld [vmem:[%s1 + $0x3e8] sm:$0xff]
    %v146 = vld [vmem:[%s1 + $0x3f0] sm:$0xff]
    %v147 = vld [vmem:[%s1 + $0x3f8] sm:$0xff]
    %148 = vmatpush.msra.mxu0 %v80
    %149 = vmatpush.msra.mxu0 %v76
    %150 = vmatpush.msra.mxu0 %v72
    %151 = vmatpush.msra.mxu0 %v68
    %152 = vmatpush.msra.mxu0 %v64
    %153 = vmatpush.msra.mxu0 %v60
    %154 = vmatpush.msra.mxu0 %v56
    %155 = vmatpush.msra.mxu0 %v52
    %156 = vmatpush.msra.mxu0 %v48
    %157 = vmatpush.msra.mxu0 %v44
    %158 = vmatpush.msra.mxu0 %v40
    %159 = vmatpush.msra.mxu0 %v36
    %160 = vmatpush.msra.mxu0 %v32
    %161 = vmatpush.msra.mxu0 %v28
    %162 = vmatpush.msra.mxu0 %v24
    %163 = vmatpush.msra.mxu0 %v20
    %164 = vmatmul.f32.gmra.mxu0 %v18
    %v165 = vpop.f32.mrf.mxu0
    %v166 = vadd.f32 0.0, %v165
    %167 = vdwg.mxu0
    %168 = vmatpush.msra.mxu0 %v144
    %169 = vmatpush.msra.mxu0 %v140
    %170 = vmatpush.msra.mxu0 %v136
    %171 = vmatpush.msra.mxu0 %v132
    %172 = vmatpush.msra.mxu0 %v128
    %173 = vmatpush.msra.mxu0 %v124
    %174 = vmatpush.msra.mxu0 %v120
    %175 = vmatpush.msra.mxu0 %v116
    %176 = vmatpush.msra.mxu0 %v112
    %177 = vmatpush.msra.mxu0 %v108
    %178 = vmatpush.msra.mxu0 %v104
    %179 = vmatpush.msra.mxu0 %v100
    %180 = vmatpush.msra.mxu0 %v96
    %181 = vmatpush.msra.mxu0 %v92
    %182 = vmatpush.msra.mxu0 %v88
    %183 = vmatpush.msra.mxu0 %v84
    %184 = vmatmul.f32.gmra.mxu0 %v19
    %v185 = vpop.f32.mrf.mxu0
    %v186 = vadd.f32 %v166, %v185
    %187 = vdwg.mxu0
    %188 = vmatpush.msra.mxu0 %v81
    %189 = vmatpush.msra.mxu0 %v77
    %190 = vmatpush.msra.mxu0 %v73
    %191 = vmatpush.msra.mxu0 %v69
    %192 = vmatpush.msra.mxu0 %v65
    %193 = vmatpush.msra.mxu0 %v61
    %194 = vmatpush.msra.mxu0 %v57
    %195 = vmatpush.msra.mxu0 %v53
    %196 = vmatpush.msra.mxu0 %v49
    %197 = vmatpush.msra.mxu0 %v45
    %198 = vmatpush.msra.mxu0 %v41
    %199 = vmatpush.msra.mxu0 %v37
    %200 = vmatpush.msra.mxu0 %v33
    %201 = vmatpush.msra.mxu0 %v29
    %202 = vmatpush.msra.mxu0 %v25
    %203 = vmatpush.msra.mxu0 %v21
    %204 = vmatmul.f32.gmra.mxu0 %v18
    %v205 = vpop.f32.mrf.mxu0
    %v206 = vadd.f32 0.0, %v205
    %207 = vdwg.mxu0
    %208 = vmatpush.msra.mxu0 %v145
    %209 = vmatpush.msra.mxu0 %v141
    %210 = vmatpush.msra.mxu0 %v137
    %211 = vmatpush.msra.mxu0 %v133
    %212 = vmatpush.msra.mxu0 %v129
    %213 = vmatpush.msra.mxu0 %v125
    %214 = vmatpush.msra.mxu0 %v121
    %215 = vmatpush.msra.mxu0 %v117
    %216 = vmatpush.msra.mxu0 %v113
    %217 = vmatpush.msra.mxu0 %v109
    %218 = vmatpush.msra.mxu0 %v105
    %219 = vmatpush.msra.mxu0 %v101
    %220 = vmatpush.msra.mxu0 %v97
    %221 = vmatpush.msra.mxu0 %v93
    %222 = vmatpush.msra.mxu0 %v89
    %223 = vmatpush.msra.mxu0 %v85
    %224 = vmatmul.f32.gmra.mxu0 %v19
    %v225 = vpop.f32.mrf.mxu0
    %v226 = vadd.f32 %v206, %v225
    %227 = vdwg.mxu0
    %228 = vmatpush.msra.mxu0 %v82
    %229 = vmatpush.msra.mxu0 %v78
    %230 = vmatpush.msra.mxu0 %v74
    %231 = vmatpush.msra.mxu0 %v70
    %232 = vmatpush.msra.mxu0 %v66
    %233 = vmatpush.msra.mxu0 %v62
    %234 = vmatpush.msra.mxu0 %v58
    %235 = vmatpush.msra.mxu0 %v54
    %236 = vmatpush.msra.mxu0 %v50
    %237 = vmatpush.msra.mxu0 %v46
    %238 = vmatpush.msra.mxu0 %v42
    %239 = vmatpush.msra.mxu0 %v38
    %240 = vmatpush.msra.mxu0 %v34
    %241 = vmatpush.msra.mxu0 %v30
    %242 = vmatpush.msra.mxu0 %v26
    %243 = vmatpush.msra.mxu0 %v22
    %244 = vmatmul.f32.gmra.mxu0 %v18
    %v245 = vpop.f32.mrf.mxu0
    %v246 = vadd.f32 0.0, %v245
    %247 = vdwg.mxu0
    %248 = vmatpush.msra.mxu0 %v146
    %249 = vmatpush.msra.mxu0 %v142
    %250 = vmatpush.msra.mxu0 %v138
    %251 = vmatpush.msra.mxu0 %v134
    %252 = vmatpush.msra.mxu0 %v130
    %253 = vmatpush.msra.mxu0 %v126
    %254 = vmatpush.msra.mxu0 %v122
    %255 = vmatpush.msra.mxu0 %v118
    %256 = vmatpush.msra.mxu0 %v114
    %257 = vmatpush.msra.mxu0 %v110
    %258 = vmatpush.msra.mxu0 %v106
    %259 = vmatpush.msra.mxu0 %v102
    %260 = vmatpush.msra.mxu0 %v98
    %261 = vmatpush.msra.mxu0 %v94
    %262 = vmatpush.msra.mxu0 %v90
    %263 = vmatpush.msra.mxu0 %v86
    %264 = vmatmul.f32.gmra.mxu0 %v19
    %v265 = vpop.f32.mrf.mxu0
    %v266 = vadd.f32 %v246, %v265
    %267 = vdwg.mxu0
    %268 = vmatpush.msra.mxu0 %v83
    %269 = vmatpush.msra.mxu0 %v79
    %270 = vmatpush.msra.mxu0 %v75
    %271 = vmatpush.msra.mxu0 %v71
    %272 = vmatpush.msra.mxu0 %v67
    %273 = vmatpush.msra.mxu0 %v63
    %274 = vmatpush.msra.mxu0 %v59
    %275 = vmatpush.msra.mxu0 %v55
    %276 = vmatpush.msra.mxu0 %v51
    %277 = vmatpush.msra.mxu0 %v47
    %278 = vmatpush.msra.mxu0 %v43
    %279 = vmatpush.msra.mxu0 %v39
    %280 = vmatpush.msra.mxu0 %v35
    %281 = vmatpush.msra.mxu0 %v31
    %282 = vmatpush.msra.mxu0 %v27
    %283 = vmatpush.msra.mxu0 %v23
    %284 = vmatmul.f32.gmra.mxu0 %v18
    %v285 = vpop.f32.mrf.mxu0
    %v286 = vadd.f32 0.0, %v285
    %287 = vdwg.mxu0
    %288 = vmatpush.msra.mxu0 %v147
    %289 = vmatpush.msra.mxu0 %v143
    %290 = vmatpush.msra.mxu0 %v139
    %291 = vmatpush.msra.mxu0 %v135
    %292 = vmatpush.msra.mxu0 %v131
    %293 = vmatpush.msra.mxu0 %v127
    %294 = vmatpush.msra.mxu0 %v123
    %295 = vmatpush.msra.mxu0 %v119
    %296 = vmatpush.msra.mxu0 %v115
    %297 = vmatpush.msra.mxu0 %v111
    %298 = vmatpush.msra.mxu0 %v107
    %299 = vmatpush.msra.mxu0 %v103
    %300 = vmatpush.msra.mxu0 %v99
    %301 = vmatpush.msra.mxu0 %v95
    %302 = vmatpush.msra.mxu0 %v91
    %303 = vmatpush.msra.mxu0 %v87
    %304 = vmatmul.f32.gmra.mxu0 %v19
    %v305 = vpop.f32.mrf.mxu0
    %v306 = vadd.f32 %v286, %v305
    %307 = vdwg.mxu0
    %v308 = vld [vmem:[%s2] sm:$0xff]
    %v309 = vld [vmem:[%s2 + $0x8] sm:$0xff]
    %v310 = vld [vmem:[%s3] sm:$0xff]
    %v311 = vld [vmem:[%s3 + $0x8] sm:$0xff]
    %313 = vset.pattern.permute.xlu0 0
    %314 = vperm.xlu0 %313, %v310
    %v315 = vpop.permute.xlu0 %314
    %318 = vset.pattern.permute.xlu0 0
    %319 = vperm.xlu0 %318, %v311
    %v320 = vpop.permute.xlu0 %319
    %vm322 = vcmask 64512
    %v324 = vsel %vm322, %v308, 0
    %v327 = vsel %vm322, %v309, 0
    %329 = vmatpush.msra.mxu0 0.0
    %330 = vmatpush.msra.mxu0 0.0
    %331 = vmatpush.msra.mxu0 0.0
    %332 = vmatpush.msra.mxu0 0.0
    %333 = vmatpush.msra.mxu0 0.0
    %334 = vmatpush.msra.mxu0 0.0
    %335 = vmatpush.msra.mxu0 0.0
    %336 = vmatpush.msra.mxu0 0.0
    %337 = vmatpush.msra.mxu0 0.0
    %338 = vmatpush.msra.mxu0 0.0
    %339 = vmatpush.msra.mxu0 0.0
    %340 = vmatpush.msra.mxu0 0.0
    %341 = vmatpush.msra.mxu0 0.0
    %342 = vmatpush.msra.mxu0 0.0
    %343 = vmatpush.msra.mxu0 0.0
    %344 = vmatpush.msra.mxu0 %v186
    %345 = vmatmul.f32.gmra.mxu0 %v324
    %v346 = vpop.f32.mrf.mxu0
    %v347 = vadd.f32 %v315, %v346
    %348 = vmatmul.f32.gmra.mxu0 %v327
    %v349 = vpop.f32.mrf.mxu0
    %v350 = vadd.f32 %v320, %v349
    %351 = vdwg.mxu0
    %352 = vmatpush.msra.mxu0 0.0
    %353 = vmatpush.msra.mxu0 0.0
    %354 = vmatpush.msra.mxu0 0.0
    %355 = vmatpush.msra.mxu0 0.0
    %356 = vmatpush.msra.mxu0 0.0
    %357 = vmatpush.msra.mxu0 0.0
    %358 = vmatpush.msra.mxu0 0.0
    %359 = vmatpush.msra.mxu0 0.0
    %360 = vmatpush.msra.mxu0 0.0
    %361 = vmatpush.msra.mxu0 0.0
    %362 = vmatpush.msra.mxu0 0.0
    %363 = vmatpush.msra.mxu0 0.0
    %364 = vmatpush.msra.mxu0 0.0
    %365 = vmatpush.msra.mxu0 0.0
    %366 = vmatpush.msra.mxu0 0.0
    %367 = vmatpush.msra.mxu0 %v226
    %368 = vmatmul.f32.gmra.mxu0 %v324
    %v369 = vpop.f32.mrf.mxu0
    %v370 = vadd.f32 %v315, %v369
    %371 = vmatmul.f32.gmra.mxu0 %v327
    %v372 = vpop.f32.mrf.mxu0
    %v373 = vadd.f32 %v320, %v372
    %374 = vdwg.mxu0
    %375 = vmatpush.msra.mxu0 0.0
    %376 = vmatpush.msra.mxu0 0.0
    %377 = vmatpush.msra.mxu0 0.0
    %378 = vmatpush.msra.mxu0 0.0
    %379 = vmatpush.msra.mxu0 0.0
    %380 = vmatpush.msra.mxu0 0.0
    %381 = vmatpush.msra.mxu0 0.0
    %382 = vmatpush.msra.mxu0 0.0
    %383 = vmatpush.msra.mxu0 0.0
    %384 = vmatpush.msra.mxu0 0.0
    %385 = vmatpush.msra.mxu0 0.0
    %386 = vmatpush.msra.mxu0 0.0
    %387 = vmatpush.msra.mxu0 0.0
    %388 = vmatpush.msra.mxu0 0.0
    %389 = vmatpush.msra.mxu0 0.0
    %390 = vmatpush.msra.mxu0 %v266
    %391 = vmatmul.f32.gmra.mxu0 %v324
    %v392 = vpop.f32.mrf.mxu0
    %v393 = vadd.f32 %v315, %v392
    %394 = vmatmul.f32.gmra.mxu0 %v327
    %v395 = vpop.f32.mrf.mxu0
    %v396 = vadd.f32 %v320, %v395
    %397 = vdwg.mxu0
    %398 = vmatpush.msra.mxu0 0.0
    %399 = vmatpush.msra.mxu0 0.0
    %400 = vmatpush.msra.mxu0 0.0
    %401 = vmatpush.msra.mxu0 0.0
    %402 = vmatpush.msra.mxu0 0.0
    %403 = vmatpush.msra.mxu0 0.0
    %404 = vmatpush.msra.mxu0 0.0
    %405 = vmatpush.msra.mxu0 0.0
    %406 = vmatpush.msra.mxu0 0.0
    %407 = vmatpush.msra.mxu0 0.0
    %408 = vmatpush.msra.mxu0 0.0
    %409 = vmatpush.msra.mxu0 0.0
    %410 = vmatpush.msra.mxu0 0.0
    %411 = vmatpush.msra.mxu0 0.0
    %412 = vmatpush.msra.mxu0 0.0
    %413 = vmatpush.msra.mxu0 %v306
    %414 = vmatmul.f32.gmra.mxu0 %v324
    %v415 = vpop.f32.mrf.mxu0
    %v416 = vadd.f32 %v315, %v415
    %417 = vmatmul.f32.gmra.mxu0 %v327
    %v418 = vpop.f32.mrf.mxu0
    %v419 = vadd.f32 %v320, %v418
    %420 = vdwg.mxu0
    %421 = vst [vmem:[#allocation2] sm:$0xff] %v347
    %422 = vst [vmem:[#allocation2 + $0x8] sm:$0xff] %v370
    %423 = vst [vmem:[#allocation2 + $0x10] sm:$0xff] %v393
    %vm424 = vcmask 785408
    %425 = vst.msk [vmem:[#allocation2 + $0x18] sm:$0xff] %vm424, %v416
    %426 = vst [vmem:[#allocation2 + $0x20] sm:$0xff] %v350
    %427 = vst [vmem:[#allocation2 + $0x28] sm:$0xff] %v373
    %428 = vst [vmem:[#allocation2 + $0x30] sm:$0xff] %v396
    %429 = vst.msk [vmem:[#allocation2 + $0x38] sm:$0xff] %vm424, %v419
    // Predicated region
    $region18: #{tpu_custom_call.1} parent=1 // pred_check
      _
    $region19: #{tpu_custom_call.1} parent=1 // pred_check_branch
      %431 = sbr.rel (0) target = $region21
    $region20: #{tpu_custom_call.1} parent=1 // pred_region
      %433 = vsyncadd [#allocation3], 0
      %s434 = sshll.u32 [#allocation2], 4
      %s435 = int_to_ptr.vmem [resolvable:$true] %s434
      %s436 = sshll.u32 %s4, 4
      %s437 = int_to_ptr.hbm [resolvable:$true] %s436
      %442 = dma.vmem_to_hbm [thread:$0]  %s435, 1024, %s437, [#allocation3], 512, 512, 32
    $region21: #{tpu_custom_call.1} parent=1 // pred_fallthru
      _
    // Predicated region
    $region22: #{tpu_custom_call.1} parent=1 // pred_check
      _
    $region23: #{tpu_custom_call.1} parent=1 // pred_check_branch
      %444 = sbr.rel (0) target = $region25
    $region24: #{tpu_custom_call.1} parent=1 // pred_region
      %446 = dma.done [#allocation3], 1024
    $region25: #{tpu_custom_call.1} parent=1 // pred_fallthru
      _
    %447 = vsyncpa [#allocation3], 1

</llo_original>
